<compile_context>
chip_gen: v5e
topology: v5e:2x2
jax: 0.10.0
libtpu: 0.0.40
codegen_flags: <defaults>
</compile_context>

<pallas_src>
import jax
import jax.numpy as jnp
from jax.experimental import pallas as pl
from jax.experimental.pallas import tpu as pltpu

LANE = 128  # lane width (last dim)
SUB = 8     # sublane width (second-to-last dim)


def _round_up(x, m):
    return ((x + m - 1) // m) * m


def actor_kernel(x_ref, w1_ref, b1_ref, w2_ref, b2_ref, out_ref):
    # Hidden layer: x @ W1 + b1, ReLU  (MXU matmul + VPU elementwise).
    h = jnp.dot(x_ref[...], w1_ref[...], preferred_element_type=jnp.float32)
    h = jnp.maximum(h + b1_ref[...], 0.0)

    # Output layer: h @ W2 + b2.  Padded output lanes of b2 carry -1e30, so
    # they vanish in the softmax without any per-step iota/compare/select.
    logits = jnp.dot(h, w2_ref[...], preferred_element_type=jnp.float32)
    logits = logits + b2_ref[...]

    # Numerically-stable softmax along the last dim (exact divide: the kernel
    # is nowhere near EUP-bound, and approx reciprocal breaks 1e-5 tolerances).
    m = jnp.max(logits, axis=-1, keepdims=True)
    e = jnp.exp(logits - m)
    denom = jnp.sum(e, axis=-1, keepdims=True)
    out_ref[...] = (e / denom).astype(out_ref.dtype)


def _actor_forward_impl(x, w1p, b1p, w2p, b2p, num_outputs, tile_cap):
    """Runs the fused MLP+softmax kernel. Padded params are passed in."""
    B, num_inputs = x.shape
    hid_p = w1p.shape[1]
    out_p = w2p.shape[1]

    # Batch tiling: >=2 parallel grid steps when the batch spans more than one
    # sublane tile (both v7x TCs get work); tile_b derived from cdiv(B, steps)
    # so last-tile padding is bounded by <8 rows.  On single-TC v5e/v6e, raise
    # tile_cap (1024-2048) for large throughput batches.
    B8 = _round_up(max(B, SUB), SUB)
    if B8 <= SUB:
        num_steps = 1
    else:
        num_steps = max(2, pl.cdiv(B8, tile_cap))
    tile_b = _round_up(pl.cdiv(B8, num_steps), SUB)
    B_pad = tile_b * num_steps

    xp = x.astype(jnp.float32)
    if B_pad != B:
        xp = jnp.zeros((B_pad, num_inputs), jnp.float32).at[:B, :].set(xp)

    # NOTE: the four weight/bias operands have a constant block index across
    # the grid; at real (large) hidden sizes on v7x (64 MiB VMEM) they should
    # be single-buffered (pipeline_mode=pl.Buffered(1)) and bf16 to halve VMEM
    # and DMA bytes — irrelevant at these toy sizes, so kept f32/default here.
    out_padded = pl.pallas_call(
        actor_kernel,
        out_shape=jax.ShapeDtypeStruct((B_pad, out_p), jnp.float32),
        grid_spec=pl.GridSpec(
            grid=(num_steps,),
            in_specs=[
                # x block's last dim == full array dim (legal, no lane padding).
                pl.BlockSpec((tile_b, num_inputs), lambda i: (i, 0)),
                pl.BlockSpec((num_inputs, hid_p), lambda i: (0, 0)),
                pl.BlockSpec((1, hid_p), lambda i: (0, 0)),
                pl.BlockSpec((hid_p, out_p), lambda i: (0, 0)),
                pl.BlockSpec((1, out_p), lambda i: (0, 0)),
            ],
            out_specs=pl.BlockSpec((tile_b, out_p), lambda i: (i, 0)),
        ),
        compiler_params=pltpu.CompilerParams(
            dimension_semantics=("parallel",),
        ),
    )(xp, w1p, b1p, w2p, b2p)

    # Slice padded batch rows / padded output lanes back off (fuses under jit).
    return out_padded[:B, :num_outputs]


def make_actor(w1, b1, w2, b2, *, tile_cap=512):
    """Pads parameters ONCE and returns a jitted forward(x) -> probs."""
    num_inputs, hidden = w1.shape
    num_outputs = w2.shape[1]
    hid_p = _round_up(hidden, LANE)
    out_p = _round_up(num_outputs, LANE)
    f32 = jnp.float32

    w1p = jnp.zeros((num_inputs, hid_p), f32).at[:, :hidden].set(w1.astype(f32))
    b1p = jnp.zeros((1, hid_p), f32).at[:, :hidden].set(b1.reshape(1, -1).astype(f32))
    w2p = jnp.zeros((hid_p, out_p), f32).at[:hidden, :num_outputs].set(w2.astype(f32))
    # Bake the output-lane mask into the bias: padded lanes get -1e30 (finite,
    # so no NaNs), real lanes get the true bias.
    b2p = (
        jnp.full((1, out_p), -1e30, f32)
        .at[:, :num_outputs]
        .set(b2.reshape(1, -1).astype(f32))
    )

    @jax.jit
    def forward(x):
        return _actor_forward_impl(x, w1p, b1p, w2p, b2p, num_outputs, tile_cap)

    return forward


def reference_forward(x, w1, b1, w2, b2):
    h = jnp.maximum(x @ w1 + b1, 0.0)
    logits = h @ w2 + b2
    return jax.nn.softmax(logits, axis=-1)


if __name__ == "__main__":
    # Small shapes consistent with the module's forward:
    #   num_inputs=32, hidden_size=64, num_outputs=16, batch=16
    B, num_inputs, hidden, num_outputs = 16, 32, 64, 16

    key = jax.random.PRNGKey(0)
    kx, k1, k2, k3, k4 = jax.random.split(key, 5)

    x = jax.random.normal(kx, (B, num_inputs), dtype=jnp.float32)

    # Deterministic parameter init (uniform, same scale idea as nn.Linear).
    lim1 = 1.0 / (num_inputs ** 0.5)
    lim2 = 1.0 / (hidden ** 0.5)
    w1 = jax.random.uniform(k1, (num_inputs, hidden), jnp.float32, -lim1, lim1)
    b1 = jax.random.uniform(k2, (1, hidden), jnp.float32, -lim1, lim1)
    w2 = jax.random.uniform(k3, (hidden, num_outputs), jnp.float32, -lim2, lim2)
    b2 = jax.random.uniform(k4, (1, num_outputs), jnp.float32, -lim2, lim2)

    actor = make_actor(w1, b1, w2, b2)  # params padded once here
    probs = actor(x)
    jax.block_until_ready(probs)

    probs_ref = reference_forward(x, w1, b1, w2, b2)
    assert probs.shape == (B, num_outputs)
    assert jnp.allclose(jnp.sum(probs, axis=-1), 1.0, atol=1e-5)
    assert jnp.allclose(probs, probs_ref, atol=1e-5, rtol=1e-5)

    # TODO(synk): Categorical(probs) sampling/log_prob is distribution-object
    # glue, not a tensor op; the kernel returns the probability table.
    print("KERNEL_OK")
</pallas_src>

<mosaic_0001>
module attributes {stable_mosaic.version = 11 : i64} {
  func.func @actor_kernel(%arg0: i32, %arg1: memref<8x32xf32, #tpu.memory_space<vmem>>, %arg2: memref<32x128xf32, #tpu.memory_space<vmem>>, %arg3: memref<1x128xf32, #tpu.memory_space<vmem>>, %arg4: memref<128x128xf32, #tpu.memory_space<vmem>>, %arg5: memref<1x128xf32, #tpu.memory_space<vmem>>, %arg6: memref<8x128xf32, #tpu.memory_space<vmem>>) attributes {dimension_semantics = [#tpu.dimension_semantics<parallel>], iteration_bounds = array<i64: 2>, scalar_prefetch = 0 : i64, scratch_operands = 0 : i64, tpu.core_type = #tpu.core_type<tc>, window_params = [{transform_indices = @transform_0, window_bounds = array<i64: 8, 32>}, {pipeline_mode = #tpu.pipeline_mode<synchronous>, transform_indices = @transform_1, window_bounds = array<i64: 32, 128>}, {pipeline_mode = #tpu.pipeline_mode<synchronous>, transform_indices = @transform_2, window_bounds = array<i64: 1, 128>}, {pipeline_mode = #tpu.pipeline_mode<synchronous>, transform_indices = @transform_3, window_bounds = array<i64: 128, 128>}, {pipeline_mode = #tpu.pipeline_mode<synchronous>, transform_indices = @transform_4, window_bounds = array<i64: 1, 128>}, {transform_indices = @transform_5, window_bounds = array<i64: 8, 128>}]} {
    %c0 = arith.constant 0 : index
    %c0_0 = arith.constant 0 : index
    %0 = vector.load %arg1[%c0, %c0_0] : memref<8x32xf32, #tpu.memory_space<vmem>>, vector<8x32xf32>
    %c0_1 = arith.constant 0 : index
    %c0_2 = arith.constant 0 : index
    %1 = vector.load %arg2[%c0_1, %c0_2] : memref<32x128xf32, #tpu.memory_space<vmem>>, vector<32x128xf32>
    %cst = arith.constant dense<0.000000e+00> : vector<8x128xf32>
    %2 = tpu.matmul %0, %1, %cst {dimension_numbers = #tpu.dot_dimension_numbers<[1], [0], [0], [1], [0, 0, 1, 1], [], []>} : vector<8x32xf32>, vector<32x128xf32>, vector<8x128xf32> -> vector<8x128xf32>
    %c0_3 = arith.constant 0 : index
    %c0_4 = arith.constant 0 : index
    %3 = vector.load %arg3[%c0_3, %c0_4] : memref<1x128xf32, #tpu.memory_space<vmem>>, vector<1x128xf32>
    %4 = vector.broadcast %3 : vector<1x128xf32> to vector<8x128xf32>
    %5 = arith.addf %2, %4 : vector<8x128xf32>
    %cst_5 = arith.constant 0.000000e+00 : f32
    %6 = vector.broadcast %cst_5 : f32 to vector<8x128xf32>
    %7 = arith.maximumf %5, %6 : vector<8x128xf32>
    %c0_6 = arith.constant 0 : index
    %c0_7 = arith.constant 0 : index
    %8 = vector.load %arg4[%c0_6, %c0_7] : memref<128x128xf32, #tpu.memory_space<vmem>>, vector<128x128xf32>
    %cst_8 = arith.constant dense<0.000000e+00> : vector<8x128xf32>
    %9 = tpu.matmul %7, %8, %cst_8 {dimension_numbers = #tpu.dot_dimension_numbers<[1], [0], [0], [1], [0, 0, 1, 1], [], []>} : vector<8x128xf32>, vector<128x128xf32>, vector<8x128xf32> -> vector<8x128xf32>
    %c0_9 = arith.constant 0 : index
    %c0_10 = arith.constant 0 : index
    %10 = vector.load %arg5[%c0_9, %c0_10] : memref<1x128xf32, #tpu.memory_space<vmem>>, vector<1x128xf32>
    %11 = vector.broadcast %10 : vector<1x128xf32> to vector<8x128xf32>
    %12 = arith.addf %9, %11 : vector<8x128xf32>
    %cst_11 = arith.constant dense<0xFF800000> : vector<8xf32>
    %13 = vector.multi_reduction <maximumf>, %12, %cst_11 [1] : vector<8x128xf32> to vector<8xf32>
    %14 = vector.shape_cast %13 : vector<8xf32> to vector<8x1xf32>
    %15 = vector.broadcast %14 : vector<8x1xf32> to vector<8x128xf32>
    %16 = arith.subf %12, %15 : vector<8x128xf32>
    %17 = math.exp %16 : vector<8x128xf32>
    %cst_12 = arith.constant dense<0.000000e+00> : vector<8xf32>
    %18 = vector.multi_reduction <add>, %17, %cst_12 [1] : vector<8x128xf32> to vector<8xf32>
    %19 = vector.shape_cast %18 : vector<8xf32> to vector<8x1xf32>
    %20 = vector.broadcast %19 : vector<8x1xf32> to vector<8x128xf32>
    %21 = arith.divf %17, %20 : vector<8x128xf32>
    %c0_13 = arith.constant 0 : index
    %c0_14 = arith.constant 0 : index
    %22 = vector.load %arg6[%c0_13, %c0_14] : memref<8x128xf32, #tpu.memory_space<vmem>>, vector<8x128xf32>
    tpu.vector_store %arg6[%c0_13, %c0_14], %21 {strides = array<i32>} : memref<8x128xf32, #tpu.memory_space<vmem>>, vector<8x128xf32>,
    return
  }
  func.func @transform_0(%arg0: i32) -> (i32, i32) {
    %c0_i32 = arith.constant 0 : i32
    %c0_i32_0 = arith.constant 0 : i32
    return %arg0, %c0_i32 : i32, i32
  }
  func.func @transform_1(%arg0: i32) -> (i32, i32) {
    %c0_i32 = arith.constant 0 : i32
    %c0_i32_0 = arith.constant 0 : i32
    %c0_i32_1 = arith.constant 0 : i32
    return %c0_i32, %c0_i32_0 : i32, i32
  }
  func.func @transform_2(%arg0: i32) -> (i32, i32) {
    %c0_i32 = arith.constant 0 : i32
    %c0_i32_0 = arith.constant 0 : i32
    %c0_i32_1 = arith.constant 0 : i32
    return %c0_i32, %c0_i32_0 : i32, i32
  }
  func.func @transform_3(%arg0: i32) -> (i32, i32) {
    %c0_i32 = arith.constant 0 : i32
    %c0_i32_0 = arith.constant 0 : i32
    %c0_i32_1 = arith.constant 0 : i32
    return %c0_i32, %c0_i32_0 : i32, i32
  }
  func.func @transform_4(%arg0: i32) -> (i32, i32) {
    %c0_i32 = arith.constant 0 : i32
    %c0_i32_0 = arith.constant 0 : i32
    %c0_i32_1 = arith.constant 0 : i32
    return %c0_i32, %c0_i32_0 : i32, i32
  }
  func.func @transform_5(%arg0: i32) -> (i32, i32) {
    %c0_i32 = arith.constant 0 : i32
    %c0_i32_0 = arith.constant 0 : i32
    return %arg0, %c0_i32 : i32, i32
  }
}

</mosaic_0001>

<llo_original>
// kernel: forward.1
$region0: #{forward.1}
  #allocation0 [shape = 'u32[]', space=smem, size = 0x4, offset = 0x4, fixed_abs, tag = 'smem constant byte address 0x4 - core index']
  #allocation1 [shape = 'u32[72,128]{1,0:T(1,128)}', space=vmem, size = 0x9000, scoped, tag = 'internal scratch']
  %s0 = inlined_call_operand.hbm [shape: f32[16,32], index: 0, kind: input, shape index: {}]
  %s1 = inlined_call_operand.hbm [shape: f32[32,128], index: 1, kind: input, shape index: {}]
  %s2 = inlined_call_operand.hbm [shape: f32[1,128], index: 2, kind: input, shape index: {}]
  %s3 = inlined_call_operand.hbm [shape: f32[128,128], index: 3, kind: input, shape index: {}]
  %s4 = inlined_call_operand.vmem [shape: f32[1,128], index: 4, kind: input, shape index: {}]
  %s5 = inlined_call_operand.hbm [shape: f32[16,128], index: 5, kind: output, shape index: {}]
  %s6 = sld [smem:[#allocation0]]
  $region69: #{forward.1} parent=0
    _
  %s8 = ssub.s32 1, %s6
  %s9 = scalar_select 0, %s8, %s6
  $region1: #{forward.1} parent=0
    #allocation2 [shape = 'u8[8192]{0}', space=vmem, size = 0x2000, scoped, tag = 'input window, operand 0']
    #allocation3 [shape = 's32[2]{0}', space=sflag, size = 0x8, scoped, tag = 'scoped memory for forward.1']
    #allocation4 [shape = 's32[2]{0}', space=sflag, size = 0x8, scoped, tag = 'scoped memory for forward.1']
    #allocation5 [shape = 'u8[16384]{0}', space=vmem, size = 0x4000, scoped, tag = 'input window, operand 1, single buffered']
    #allocation6 [shape = 's32[1]{0}', space=sflag, size = 0x4, scoped, tag = 'scoped memory for forward.1']
    #allocation7 [shape = 'u8[512]{0}', space=vmem, size = 0x400, scoped, tag = 'input window, operand 2, single buffered']
    #allocation8 [shape = 'u8[65536]{0}', space=vmem, size = 0x10000, scoped, tag = 'input window, operand 3, single buffered']
    #allocation9 [shape = 's32[1]{0}', space=sflag, size = 0x4, scoped, tag = 'scoped memory for forward.1']
    #allocation10 [shape = 'u8[8192]{0}', space=vmem, size = 0x2000, scoped, tag = 'output window, operand 0']
    %10 = vsyncpa [#allocation3], 0
    %s11 = scalar_lea.sflag [#allocation3], 1
    %12 = vsyncpa %s11, 0
    %13 = vsyncpa [#allocation6], 0
    %14 = vsyncpa [#allocation9], 0
    %15 = vsyncpa [#allocation4], 0
    %s16 = scalar_lea.sflag [#allocation4], 1
    %17 = vsyncpa %s16, 0
    loop: start=0, step=1, limit=4
    $region2: #{forward.1} parent=1 // loop_pre_header
      _
    $region3: #{forward.1} parent=1 // loop_header
      %s19 = sphi 0, %s23
      %p20 = scmp.ge.s32.totalorder %s19, 4
      %s29 = sphi 0, %s31
      %s32 = sphi 0, %s29
      %s33 = sphi 0, %s32
      %s49 = sphi 0, %s33
      %s53 = sphi 0, %s53
      %s55 = sphi 0, %s53
      %s56 = sphi 0, %s55
      %s70 = sphi 0, %s56
      %s74 = sphi 0, %s74
      %s76 = sphi 0, %s74
      %s77 = sphi 0, %s76
      %s91 = sphi 0, %s77
      %s95 = sphi 0, %s95
      %s97 = sphi 0, %s95
      %s98 = sphi 0, %s97
      %s112 = sphi 0, %s98
      %s116 = sphi 0, %s116
      %s118 = sphi 0, %s116
      %s119 = sphi 0, %s118
      %s133 = sphi 0, %s119
      %s139 = sphi 0, %s141
      %s142 = sphi 0, %s139
      %s143 = sphi 0, %s142
      %s159 = sphi 0, %s143
    $region4: #{forward.1} parent=1 // loop_header_branch
      %22 = sbr.rel (%p20) target = $region8
    $region5: #{forward.1} parent=1 // loop_body
      %s24 = ssub.s32 %s19, 1
      %s25 = ssub.s32 %s19, 2
      %s26 = sadd.s32 %s19, 1
      %s27 = ssub.s32 %s19, %s26
      %p28 = scmp.eq.s32.totalorder %s27, 0
      %s30 = sadd.s32 %s29, 1
      %s31 = scalar_select %p28, %s29, %s30
      %p34 = pneg %p28
      %p35 = scmp.eq.s32.totalorder %s19, 1
      %p36 = por %p34, %p35
      %p37 = scmp.ne.s32.totalorder %s29, %s32
      %p38 = scmp.eq.s32.totalorder %s19, 0
      %p39 = por %p37, %p38
      %p40 = scmp.ne.s32.totalorder %s29, %s32
      %p41 = scmp.eq.s32.totalorder %s24, 1
      %p42 = por %p40, %p41
      %p43 = scmp.ne.s32.totalorder %s32, %s33
      %p44 = scmp.eq.s32.totalorder %s24, 0
      %p45 = por %p43, %p44
      %p46 = scmp.ne.s32.totalorder %s32, %s33
      %p47 = scmp.eq.s32.totalorder %s25, 1
      %p48 = por %p46, %p47
      %p50 = scmp.ne.s32.totalorder %s33, %s49
      %p51 = scmp.eq.s32.totalorder %s25, 0
      %p52 = por %p50, %p51
      %s54 = sadd.s32 %s53, 1
      %p57 = scmp.eq.s32.totalorder %s19, 1
      %p58 = scmp.ne.s32.totalorder %s53, %s55
      %p59 = scmp.eq.s32.totalorder %s19, 0
      %p60 = por %p58, %p59
      %p61 = scmp.ne.s32.totalorder %s53, %s55
      %p62 = scmp.eq.s32.totalorder %s24, 1
      %p63 = por %p61, %p62
      %p64 = scmp.ne.s32.totalorder %s55, %s56
      %p65 = scmp.eq.s32.totalorder %s24, 0
      %p66 = por %p64, %p65
      %p67 = scmp.ne.s32.totalorder %s55, %s56
      %p68 = scmp.eq.s32.totalorder %s25, 1
      %p69 = por %p67, %p68
      %p71 = scmp.ne.s32.totalorder %s56, %s70
      %p72 = scmp.eq.s32.totalorder %s25, 0
      %p73 = por %p71, %p72
      %s75 = sadd.s32 %s74, 1
      %p78 = scmp.eq.s32.totalorder %s19, 1
      %p79 = scmp.ne.s32.totalorder %s74, %s76
      %p80 = scmp.eq.s32.totalorder %s19, 0
      %p81 = por %p79, %p80
      %p82 = scmp.ne.s32.totalorder %s74, %s76
      %p83 = scmp.eq.s32.totalorder %s24, 1
      %p84 = por %p82, %p83
      %p85 = scmp.ne.s32.totalorder %s76, %s77
      %p86 = scmp.eq.s32.totalorder %s24, 0
      %p87 = por %p85, %p86
      %p88 = scmp.ne.s32.totalorder %s76, %s77
      %p89 = scmp.eq.s32.totalorder %s25, 1
      %p90 = por %p88, %p89
      %p92 = scmp.ne.s32.totalorder %s77, %s91
      %p93 = scmp.eq.s32.totalorder %s25, 0
      %p94 = por %p92, %p93
      %s96 = sadd.s32 %s95, 1
      %p99 = scmp.eq.s32.totalorder %s19, 1
      %p100 = scmp.ne.s32.totalorder %s95, %s97
      %p101 = scmp.eq.s32.totalorder %s19, 0
      %p102 = por %p100, %p101
      %p103 = scmp.ne.s32.totalorder %s95, %s97
      %p104 = scmp.eq.s32.totalorder %s24, 1
      %p105 = por %p103, %p104
      %p106 = scmp.ne.s32.totalorder %s97, %s98
      %p107 = scmp.eq.s32.totalorder %s24, 0
      %p108 = por %p106, %p107
      %p109 = scmp.ne.s32.totalorder %s97, %s98
      %p110 = scmp.eq.s32.totalorder %s25, 1
      %p111 = por %p109, %p110
      %p113 = scmp.ne.s32.totalorder %s98, %s112
      %p114 = scmp.eq.s32.totalorder %s25, 0
      %p115 = por %p113, %p114
      %s117 = sadd.s32 %s116, 1
      %p120 = scmp.eq.s32.totalorder %s19, 1
      %p121 = scmp.ne.s32.totalorder %s116, %s118
      %p122 = scmp.eq.s32.totalorder %s19, 0
      %p123 = por %p121, %p122
      %p124 = scmp.ne.s32.totalorder %s116, %s118
      %p125 = scmp.eq.s32.totalorder %s24, 1
      %p126 = por %p124, %p125
      %p127 = scmp.ne.s32.totalorder %s118, %s119
      %p128 = scmp.eq.s32.totalorder %s24, 0
      %p129 = por %p127, %p128
      %p130 = scmp.ne.s32.totalorder %s118, %s119
      %p131 = scmp.eq.s32.totalorder %s25, 1
      %p132 = por %p130, %p131
      %p134 = scmp.ne.s32.totalorder %s119, %s133
      %p135 = scmp.eq.s32.totalorder %s25, 0
      %p136 = por %p134, %p135
      %s137 = ssub.s32 %s19, %s26
      %p138 = scmp.eq.s32.totalorder %s137, 0
      %s140 = sadd.s32 %s139, 1
      %s141 = scalar_select %p138, %s139, %s140
      %p144 = pneg %p138
      %p145 = scmp.eq.s32.totalorder %s19, 1
      %p146 = por %p144, %p145
      %p147 = scmp.ne.s32.totalorder %s139, %s142
      %p148 = scmp.eq.s32.totalorder %s19, 0
      %p149 = por %p147, %p148
      %p150 = scmp.ne.s32.totalorder %s139, %s142
      %p151 = scmp.eq.s32.totalorder %s24, 1
      %p152 = por %p150, %p151
      %p153 = scmp.ne.s32.totalorder %s142, %s143
      %p154 = scmp.eq.s32.totalorder %s24, 0
      %p155 = por %p153, %p154
      %p156 = scmp.ne.s32.totalorder %s142, %s143
      %p157 = scmp.eq.s32.totalorder %s25, 1
      %p158 = por %p156, %p157
      %p160 = scmp.ne.s32.totalorder %s143, %s159
      %p161 = scmp.eq.s32.totalorder %s25, 0
      %p162 = por %p160, %p161
      %p163 = scmp.le.s32.totalorder 1, %s19
      %p164 = scmp.lt.s32.totalorder %s19, 3
      %p165 = pnand %p163, %p164
      %p166 = pneg %p165
      // Predicated region
      $region9: #{forward.1} parent=5 // pred_check
        _
      $region10: #{forward.1} parent=5 // pred_check_branch
        %168 = sbr.rel (%p165) target = $region12
      $region11: #{forward.1} parent=5 // pred_region
        %s169 = ssub.s32 %s19, 1
        // Predicated region
        $region13: #{forward.1} parent=11 // pred_check
          %p170 = pneg %p66
        $region14: #{forward.1} parent=11 // pred_check_branch
          %172 = sbr.rel (%p170) target = $region16
        $region15: #{forward.1} parent=11 // pred_region
          %174 = vsyncadd [#allocation6], 0
          %s175 = sshll.u32 %s1, 4
          %s176 = int_to_ptr.hbm [resolvable:$true] %s175
          %s177 = sshll.u32 [#allocation5], 4
          %s178 = int_to_ptr.vmem [resolvable:$true] %s177
          %183 = dma.hbm_to_vmem [thread:$0]  %s176, 512, %s178, [#allocation6], 128, 128, 8
        $region16: #{forward.1} parent=11 // pred_fallthru
          _
        // Predicated region
        $region17: #{forward.1} parent=11 // pred_check
          %p184 = pneg %p87
        $region18: #{forward.1} parent=11 // pred_check_branch
          %186 = sbr.rel (%p184) target = $region20
        $region19: #{forward.1} parent=11 // pred_region
          %188 = vsyncadd [#allocation6], 0
          %s190 = sshll.u32 %s2, 4
          %s191 = int_to_ptr.hbm [resolvable:$true] %s190
          %s192 = sshll.u32 [#allocation7], 4
          %s193 = int_to_ptr.vmem [resolvable:$true] %s192
          %195 = dma.hbm_to_vmem [thread:$0]  %s191, 16, %s193, [#allocation6]
        $region20: #{forward.1} parent=11 // pred_fallthru
          _
        // Predicated region
        $region21: #{forward.1} parent=11 // pred_check
          %p196 = pneg %p108
        $region22: #{forward.1} parent=11 // pred_check_branch
          %198 = sbr.rel (%p196) target = $region24
        $region23: #{forward.1} parent=11 // pred_region
          %200 = vsyncadd [#allocation9], 0
          %s201 = sshll.u32 %s3, 4
          %s202 = int_to_ptr.hbm [resolvable:$true] %s201
          %s203 = sshll.u32 [#allocation8], 4
          %s204 = int_to_ptr.vmem [resolvable:$true] %s203
          %209 = dma.hbm_to_vmem [thread:$0]  %s202, 2048, %s204, [#allocation9], 128, 128, 8
        $region24: #{forward.1} parent=11 // pred_fallthru
          _
        // Predicated region
        $region25: #{forward.1} parent=11 // pred_check
          %p210 = pneg %p129
        $region26: #{forward.1} parent=11 // pred_check_branch
          %212 = sbr.rel (%p210) target = $region28
        $region27: #{forward.1} parent=11 // pred_region
          _
        $region28: #{forward.1} parent=11 // pred_fallthru
          _
      $region12: #{forward.1} parent=5 // pred_fallthru
        _
      %p213 = scmp.lt.s32.totalorder %s19, 2
      // Predicated region
      $region29: #{forward.1} parent=5 // pred_check
        %p214 = pneg %p213
      $region30: #{forward.1} parent=5 // pred_check_branch
        %216 = sbr.rel (%p214) target = $region32
      $region31: #{forward.1} parent=5 // pred_region
        // Predicated region
        $region33: #{forward.1} parent=31 // pred_check
          %p217 = pneg %p39
        $region34: #{forward.1} parent=31 // pred_check_branch
          %219 = sbr.rel (%p217) target = $region36
        $region35: #{forward.1} parent=31 // pred_region
          %s220 = sand.u32 %s29, 1
          %s221 = scalar_lea.sflag [#allocation3], %s220
          %s222 = sand.u32 %s29, 1
          %s223 = smul.addr %s222, 8
          %s224 = scalar_lea.vmem [#allocation2], %s223
          %226 = vsyncadd %s221, 0
          %s227 = smul.addr %s19, 8
          %s228 = scalar_lea.hbm %s0, %s227
          %s230 = sshll.u32 %s228, 4
          %s231 = int_to_ptr.hbm [resolvable:$true] %s230
          %s232 = sshll.u32 %s224, 4
          %s233 = int_to_ptr.vmem [resolvable:$true] %s232
          %235 = dma.hbm_to_vmem [thread:$0]  %s231, 128, %s233, %s221
        $region36: #{forward.1} parent=31 // pred_fallthru
          _
      $region32: #{forward.1} parent=5 // pred_fallthru
        _
      %p236 = scmp.le.s32.totalorder 1, %s19
      %p237 = scmp.lt.s32.totalorder %s19, 3
      %p238 = pnand %p236, %p237
      %p239 = pneg %p238
      // Predicated region
      $region37: #{forward.1} parent=5 // pred_check
        _
      $region38: #{forward.1} parent=5 // pred_check_branch
        %241 = sbr.rel (%p238) target = $region40
      $region39: #{forward.1} parent=5 // pred_region
        %s242 = ssub.s32 %s19, 1
        %s243 = sand.u32 %s32, 1
        %s244 = scalar_lea.sflag [#allocation3], %s243
        %s245 = sand.u32 %s32, 1
        %s246 = smul.addr %s245, 8
        %s247 = scalar_lea.vmem [#allocation2], %s246
        // Predicated region
        $region41: #{forward.1} parent=39 // pred_check
          %p248 = pneg %p45
        $region42: #{forward.1} parent=39 // pred_check_branch
          %250 = sbr.rel (%p248) target = $region44
        $region43: #{forward.1} parent=39 // pred_region
          %252 = dma.done %s244, 128
        $region44: #{forward.1} parent=39 // pred_fallthru
          _
        // Predicated region
        $region45: #{forward.1} parent=39 // pred_check
          %p253 = pneg %p66
        $region46: #{forward.1} parent=39 // pred_check_branch
          %255 = sbr.rel (%p253) target = $region48
        $region47: #{forward.1} parent=39 // pred_region
          %257 = dma.done [#allocation6], 512
        $region48: #{forward.1} parent=39 // pred_fallthru
          _
        // Predicated region
        $region49: #{forward.1} parent=39 // pred_check
          %p258 = pneg %p87
        $region50: #{forward.1} parent=39 // pred_check_branch
          %260 = sbr.rel (%p258) target = $region52
        $region51: #{forward.1} parent=39 // pred_region
          %262 = dma.done [#allocation6], 16
        $region52: #{forward.1} parent=39 // pred_fallthru
          _
        // Predicated region
        $region53: #{forward.1} parent=39 // pred_check
          %p263 = pneg %p108
        $region54: #{forward.1} parent=39 // pred_check_branch
          %265 = sbr.rel (%p263) target = $region56
        $region55: #{forward.1} parent=39 // pred_region
          %267 = dma.done [#allocation9], 2048
        $region56: #{forward.1} parent=39 // pred_fallthru
          _
        %s268 = sand.u32 %s32, 1
        %s269 = scalar_lea.sflag [#allocation3], %s268
        %s270 = sand.u32 %s32, 1
        %s271 = smul.addr %s270, 8
        %s272 = scalar_lea.vmem [#allocation2], %s271
        %p273 = pneg %p45
        %p274 = pneg %p42
        %p275 = pneg %p66
        %p276 = pneg %p63
        %p277 = pneg %p87
        %p278 = pneg %p84
        %p279 = pneg %p108
        %p280 = pneg %p105
        %p281 = pneg %p129
        %p282 = pneg %p126
        %p283 = pneg %p155
        %p284 = pneg %p152
        %s285 = sand.u32 %s142, 1
        %s286 = scalar_lea.sflag [#allocation4], %s285
        %s287 = sand.u32 %s142, 1
        %s288 = smul.addr %s287, 8
        %s289 = scalar_lea.vmem [#allocation10], %s288
        %v290 = vld [vmem:[%s247] sm:$0xff]
        %v291 = vld [vmem:[#allocation5] sm:$0xff]
        %v292 = vld [vmem:[#allocation5 + $0x8] sm:$0xff]
        %v293 = vld [vmem:[#allocation5 + $0x10] sm:$0xff]
        %v294 = vld [vmem:[#allocation5 + $0x18] sm:$0xff]
        %v295 = vld [vmem:[#allocation7] sm:$0x1]
        %v297 = vperm.slane %v295, 0
        %vm299 = vcmask 261120
        %v301 = vsel %vm299, %v290, 0
        %303 = vmatpush.msra.mxu0 0.0
        %304 = vmatpush.msra.mxu0 0.0
        %305 = vmatpush.msra.mxu0 0.0
        %306 = vmatpush.msra.mxu0 0.0
        %307 = vmatpush.msra.mxu0 0.0
        %308 = vmatpush.msra.mxu0 0.0
        %309 = vmatpush.msra.mxu0 0.0
        %310 = vmatpush.msra.mxu0 0.0
        %311 = vmatpush.msra.mxu0 0.0
        %312 = vmatpush.msra.mxu0 0.0
        %313 = vmatpush.msra.mxu0 0.0
        %314 = vmatpush.msra.mxu0 0.0
        %315 = vmatpush.msra.mxu0 %v294
        %316 = vmatpush.msra.mxu0 %v293
        %317 = vmatpush.msra.mxu0 %v292
        %318 = vmatpush.msra.mxu0 %v291
        %319 = vmatmul.f32.gmra.mxu0 %v301
        %v320 = vpop.f32.mrf.mxu0
        %v321 = vadd.f32 %v297, %v320
        %322 = vdwg.mxu0
        %v323 = vmax.f32 %v321, 0.0
        %v324 = vld [vmem:[#allocation8] sm:$0xff]
        %v325 = vld [vmem:[#allocation8 + $0x8] sm:$0xff]
        %v326 = vld [vmem:[#allocation8 + $0x10] sm:$0xff]
        %v327 = vld [vmem:[#allocation8 + $0x18] sm:$0xff]
        %v328 = vld [vmem:[#allocation8 + $0x20] sm:$0xff]
        %v329 = vld [vmem:[#allocation8 + $0x28] sm:$0xff]
        %v330 = vld [vmem:[#allocation8 + $0x30] sm:$0xff]
        %v331 = vld [vmem:[#allocation8 + $0x38] sm:$0xff]
        %v332 = vld [vmem:[#allocation8 + $0x40] sm:$0xff]
        %v333 = vld [vmem:[#allocation8 + $0x48] sm:$0xff]
        %v334 = vld [vmem:[#allocation8 + $0x50] sm:$0xff]
        %v335 = vld [vmem:[#allocation8 + $0x58] sm:$0xff]
        %v336 = vld [vmem:[#allocation8 + $0x60] sm:$0xff]
        %v337 = vld [vmem:[#allocation8 + $0x68] sm:$0xff]
        %v338 = vld [vmem:[#allocation8 + $0x70] sm:$0xff]
        %v339 = vld [vmem:[#allocation8 + $0x78] sm:$0xff]
        %v340 = vld [vmem:[%s4] sm:$0x1]
        %v342 = vperm.slane %v340, 0
        %344 = vmatpush.msra.mxu0 %v339
        %345 = vmatpush.msra.mxu0 %v338
        %346 = vmatpush.msra.mxu0 %v337
        %347 = vmatpush.msra.mxu0 %v336
        %348 = vmatpush.msra.mxu0 %v335
        %349 = vmatpush.msra.mxu0 %v334
        %350 = vmatpush.msra.mxu0 %v333
        %351 = vmatpush.msra.mxu0 %v332
        %352 = vmatpush.msra.mxu0 %v331
        %353 = vmatpush.msra.mxu0 %v330
        %354 = vmatpush.msra.mxu0 %v329
        %355 = vmatpush.msra.mxu0 %v328
        %356 = vmatpush.msra.mxu0 %v327
        %357 = vmatpush.msra.mxu0 %v326
        %358 = vmatpush.msra.mxu0 %v325
        %359 = vmatpush.msra.mxu0 %v324
        %360 = vmatmul.f32.gmra.mxu0 %v323
        %v361 = vpop.f32.mrf.mxu0
        %v362 = vadd.f32 %v342, %v361
        %363 = vdwg.mxu0
        %364 = vmax.xlane.f32.xlu0 %v362
        %v365 = vpop.xlane.xlu0 %364
        %v366 = vsub.f32 %v362, %v365
        %v367 = vmul.f32 %v366, 1.442695
        %v368 = vpow.pop %v367
        %369 = vadd.xlane.f32.xlu0 %v368
        %v370 = vpop.xlane.xlu0 %369
        %v371 = vrcp.pop %v370
        %v372 = vmul.f32 %v370, %v371
        %v373 = vsub.f32 1.0, %v372
        %v374 = vmul.f32 %v371, %v373
        %v375 = vadd.f32 %v371, %v374
        %vm376 = vweird.f32 %v370
        %vm377 = vweird.f32 %v371
        %vm378 = vmor %vm376, %vm377
        %v379 = vsel %vm378, %v371, %v375
        %v380 = vand.u32 2147483647, %v370
        %vm381 = vcmp.eq.f32.partialorder %v380, 8.507059e+37
        %v382 = vand.u32 %v370, 2147483648
        %v383 = vor.u32 1.1754944e-38, %v382
        %v384 = vsel %vm381, %v383, %v379
        %v385 = vmul.f32 %v368, %v384
        %386 = vst [vmem:[%s289] sm:$0xff] %v385
        %s387 = sand.u32 %s142, 1
        %s388 = scalar_lea.sflag [#allocation4], %s387
        %s389 = sand.u32 %s142, 1
        %s390 = smul.addr %s389, 8
        %s391 = scalar_lea.vmem [#allocation10], %s390
        // Predicated region
        $region57: #{forward.1} parent=39 // pred_check
          %p392 = pneg %p152
        $region58: #{forward.1} parent=39 // pred_check_branch
          %394 = sbr.rel (%p392) target = $region60
        $region59: #{forward.1} parent=39 // pred_region
          %396 = vsyncadd %s388, 0
          %s397 = smul.addr %s24, 8
          %s398 = scalar_lea.hbm %s5, %s397
          %s400 = sshll.u32 %s391, 4
          %s401 = int_to_ptr.vmem [resolvable:$true] %s400
          %s402 = sshll.u32 %s398, 4
          %s403 = int_to_ptr.hbm [resolvable:$true] %s402
          %405 = dma.vmem_to_hbm [thread:$0]  %s401, 128, %s403, %s388
        $region60: #{forward.1} parent=39 // pred_fallthru
          _
      $region40: #{forward.1} parent=5 // pred_fallthru
        _
      %p406 = scmp.le.s32.totalorder 2, %s19
      // Predicated region
      $region61: #{forward.1} parent=5 // pred_check
        %p407 = pneg %p406
      $region62: #{forward.1} parent=5 // pred_check_branch
        %409 = sbr.rel (%p407) target = $region64
      $region63: #{forward.1} parent=5 // pred_region
        %s410 = ssub.s32 %s19, 2
        // Predicated region
        $region65: #{forward.1} parent=63 // pred_check
          %p411 = pneg %p158
        $region66: #{forward.1} parent=63 // pred_check_branch
          %413 = sbr.rel (%p411) target = $region68
        $region67: #{forward.1} parent=63 // pred_region
          %s414 = sand.u32 %s143, 1
          %s415 = scalar_lea.sflag [#allocation4], %s414
          %s416 = sand.u32 %s143, 1
          %s417 = smul.addr %s416, 8
          %s418 = scalar_lea.vmem [#allocation10], %s417
          %420 = dma.done %s415, 128
        $region68: #{forward.1} parent=63 // pred_fallthru
          _
      $region64: #{forward.1} parent=5 // pred_fallthru
        _
    $region6: #{forward.1} parent=1 // loop_footer
      %s23 = sadd.s32 1, %s19
    $region7: #{forward.1} parent=1 // loop_footer_branch
      %18 = sbr.rel target = $region3
    $region8: #{forward.1} parent=1 // loop_exit
      _
    %421 = vsyncpa [#allocation3], 1
    %s422 = scalar_lea.sflag [#allocation3], 1
    %423 = vsyncpa %s422, 1
    %424 = vsyncpa [#allocation6], 1
    %425 = vsyncpa [#allocation9], 1
    %426 = vsyncpa [#allocation4], 1
    %s427 = scalar_lea.sflag [#allocation4], 1
    %428 = vsyncpa %s427, 1

</llo_original>
